<compile_context>
chip_gen: v7x
topology: tpu7x:2x2x1
jax: 0.10.0
libtpu: 0.0.40
codegen_flags: <defaults>
</compile_context>

<pallas_src>
import functools

import jax
import jax.numpy as jnp
from jax import lax
from jax.experimental import pallas as pl
from jax.experimental.pallas import tpu as pltpu

EPSILON = 1e-08
MAX_RADIUS = 0.99   # Hyperbolic(max_radius=0.99)
SCALE = 0.01        # Hyperbolic(scale=0.01)

_LANES = 128


def _log1p_stable(u):
    """Numerically stable log(1 + u) from ops that always lower on Mosaic."""
    w = 1.0 + u
    den = jnp.where(w == 1.0, jnp.float32(1.0), w - 1.0)
    return jnp.where(w == 1.0, u, jnp.log(w) * (u / den))


def _poincare_normalize(v, max_radius):
    """Hyperbolic.normalize folded into one per-row scale factor.

    v: (rows, 128, D).  tanh / divide run on the small (rows, 128, 1) norms;
    only a single full-width multiply touches the D lanes.
    """
    norm = jnp.sqrt(jnp.sum(v * v, axis=-1, keepdims=True) + EPSILON)
    factor = (jnp.tanh(norm) * max_radius) / (norm + EPSILON)
    return v * factor


def _hyperbolic_kernel(x_ref, y_ref, o_ref, *, scale, max_radius,
                       fuse_normalize, V, tv):
    rows = tv // _LANES
    D = x_ref.shape[-1]

    x = x_ref[...].astype(jnp.float32)                 # (tv, D)
    y = y_ref[...].astype(jnp.float32)

    # Free reinterpretation (leading-dim split on the sublane tiling): the
    # per-row scalars below land on a dense (rows, 128) grid instead of a
    # one-value-per-sublane (tv,) vector.
    x = x.reshape(rows, _LANES, D)
    y = y.reshape(rows, _LANES, D)

    if fuse_normalize:
        # Fused Hyperbolic.normalize (tanh goes to the EUP slot: ~free here).
        x = _poincare_normalize(x, max_radius)
        y = _poincare_normalize(y, max_radius)

    d = x - y
    xy_sq = jnp.sum(d * d, axis=-1)                    # (rows, 128)
    one_minus_x = 1.0 - jnp.sum(x * x, axis=-1)        # (rows, 128)
    one_minus_y = 1.0 - jnp.sum(y * y, axis=-1)        # (rows, 128)

    # NOTE: rows with squared norm >= 1 (outside the open ball) produce NaN,
    # exactly matching torch.acosh's domain failure in the reference.
    delta = 2.0 * xy_sq / (one_minus_x * one_minus_y)
    t = 2.0 * delta + EPSILON * 10.0                   # t >= 1e-7 for valid rows

    if V % tv != 0:
        # Partial last tile: rows past V were never DMA'd; replace their t with
        # a benign value so no NaN/Inf reaches the (discarded) output lanes.
        row0 = pl.program_id(0) * tv
        gidx = (row0
                + lax.broadcasted_iota(jnp.int32, (rows, _LANES), 0) * _LANES
                + lax.broadcasted_iota(jnp.int32, (rows, _LANES), 1))
        t = jnp.where(gidx < V, t, jnp.float32(1.0))

    # acosh(1 + t) = log1p(t + sqrt(t * (t + 2))): no cancellation near t == 0.
    u = t + jnp.sqrt(t * (t + 2.0))
    dist = _log1p_stable(u) * scale                    # (rows, 128), dense

    o_ref[...] = dist.astype(o_ref.dtype)              # full-vreg unmasked store


def _vmem_capacity_bytes():
    try:
        return int(pltpu.get_tpu_info().vmem_capacity_bytes)
    except Exception:
        return 64 * 1024 * 1024        # conservative: v7x per-TensorCore VMEM


def _choose_tv(V, D):
    """Row-tile size: multiple of 128, as large as a generation-aware VMEM
    budget allows (<= 16384), shrunk for tiny V, and keeping several grid
    steps for large V (v7x megacore load balance)."""
    d_lanes = ((max(D, 1) + _LANES - 1) // _LANES) * _LANES   # lane-padded width
    # Double-buffered f32 input blocks get ~1/3 of physical VMEM (<= 40 MiB):
    #   v5e/v6e (128 MiB) -> 40 MiB -> tv = 16384 at D <= 128
    #   v7x     (64 MiB)  -> ~21 MiB -> tv = 8192
    budget = min(_vmem_capacity_bytes() // 3, 40 * 1024 * 1024)
    per_row = 2 * 2 * 4 * d_lanes       # 2 inputs x 2 buffers x f32 x lanes
    cap = max(_LANES, budget // per_row)
    tv = _LANES
    while tv * 2 <= cap and tv * 2 <= 16384:
        tv *= 2
    # Don't allocate pointlessly large tiles for tiny problems.
    while tv > _LANES and V <= tv // 2:
        tv //= 2
    # Keep >= 4 grid steps for large V so both v7x cores stay busy and an odd
    # tile count does not leave a lopsided tail (no effect on v5e/v6e).
    while tv > 1024 and pl.cdiv(V, tv) < 4:
        tv //= 2
    return tv


def hyperbolic_distance(x, y, *, scale=SCALE, max_radius=MAX_RADIUS,
                        normalize_inputs=False, tv=None):
    """Pairwise Poincaré distance between rows of x and y. Returns (V,) f32.

    Inputs may be f32 or bf16 (compute is f32 in-kernel).  With
    normalize_inputs=True, Hyperbolic.normalize is fused into the kernel (raw
    vectors in, distances out, no extra HBM pass); the default matches
    Hyperbolic.forward exactly on pre-normalized inputs.
    """
    V, D = x.shape
    assert y.shape == (V, D)
    if tv is None:
        tv = _choose_tv(V, D)
    assert tv % _LANES == 0 and tv > 0
    rows = tv // _LANES
    num_tiles = pl.cdiv(V, tv)

    kernel = functools.partial(
        _hyperbolic_kernel, scale=scale, max_radius=max_radius,
        fuse_normalize=normalize_inputs, V=V, tv=tv)

    out = pl.pallas_call(
        kernel,
        out_shape=jax.ShapeDtypeStruct((num_tiles * rows, _LANES), jnp.float32),
        grid_spec=pltpu.PrefetchScalarGridSpec(
            num_scalar_prefetch=0,
            grid=(num_tiles,),
            in_specs=[
                pl.BlockSpec((tv, D), lambda i: (i, 0)),
                pl.BlockSpec((tv, D), lambda i: (i, 0)),
            ],
            out_specs=pl.BlockSpec((rows, _LANES), lambda i: (i, 0)),
        ),
        compiler_params=pltpu.CompilerParams(
            dimension_semantics=("parallel",),
            vmem_limit_bytes=min(_vmem_capacity_bytes(), 48 * 1024 * 1024),
        ),
    )(x, y)
    # Output is written lane-dense and padded up to a whole tile; slice it off.
    return out.reshape(num_tiles * tv)[:V]


# --- plain-JAX glue mirroring Hyperbolic.normalize (for building test inputs)
def safe_norm(x, axis=None, keepdims=False):
    return jnp.sqrt(jnp.sum(x * x, axis=axis, keepdims=keepdims) + EPSILON)


def hyperbolic_normalize(v, max_radius=MAX_RADIUS):
    norms = safe_norm(v, axis=-1)
    new_norms = jnp.tanh(norms) * max_radius
    unit = v / (norms[..., None] + EPSILON)
    return unit * new_norms[..., None]


# --- pure-JAX reference of Hyperbolic.forward for verification
def hyperbolic_forward_ref(x, y, scale=SCALE):
    xy = jnp.sum((x - y) ** 2, axis=-1)
    omx = 1.0 - jnp.sum(x ** 2, axis=-1)
    omy = 1.0 - jnp.sum(y ** 2, axis=-1)
    delta = 2.0 * xy / (omx * omy)
    return jnp.arccosh(1.0 + 2.0 * delta + EPSILON * 10.0) * scale


if __name__ == "__main__":
    key = jax.random.PRNGKey(0)
    k1, k2 = jax.random.split(key)
    V, D = 16, 32

    raw1 = jax.random.normal(k1, (V, D), dtype=jnp.float32)
    raw2 = jax.random.normal(k2, (V, D), dtype=jnp.float32)

    v1 = hyperbolic_normalize(raw1)
    v2 = hyperbolic_normalize(raw2)
    ref = hyperbolic_forward_ref(v1, v2)

    # Path 1: module-exact forward on pre-normalized vectors.
    out = jax.block_until_ready(hyperbolic_distance(v1, v2))
    assert out.shape == (V,)
    assert jnp.allclose(out, ref, rtol=1e-4, atol=1e-6), (out, ref)

    # Path 2: normalize fused into the kernel (raw vectors in).
    out_fused = jax.block_until_ready(
        hyperbolic_distance(raw1, raw2, normalize_inputs=True))
    assert out_fused.shape == (V,)
    assert jnp.allclose(out_fused, ref, rtol=5e-4, atol=1e-5), (out_fused, ref)

    # Path 3: V not a multiple of 128 -> partial last block, in-kernel mask
    # (no jnp.pad copy of the inputs).
    Vr = 13
    out_rem = jax.block_until_ready(hyperbolic_distance(v1[:Vr], v2[:Vr]))
    assert out_rem.shape == (Vr,)
    assert jnp.allclose(out_rem, ref[:Vr], rtol=1e-4, atol=1e-6), (out_rem, ref[:Vr])

    # Path 4: bf16 inputs accepted (half HBM traffic); compare against the
    # reference evaluated on the same bf16-rounded values.
    v1_bf = v1.astype(jnp.bfloat16)
    v2_bf = v2.astype(jnp.bfloat16)
    ref_bf = hyperbolic_forward_ref(v1_bf.astype(jnp.float32),
                                    v2_bf.astype(jnp.float32))
    out_bf = jax.block_until_ready(hyperbolic_distance(v1_bf, v2_bf))
    assert out_bf.shape == (V,)
    assert jnp.allclose(out_bf, ref_bf, rtol=1e-3, atol=1e-5), (out_bf, ref_bf)

    print("KERNEL_OK")
</pallas_src>

<mosaic_0001>
module attributes {stable_mosaic.version = 11 : i64} {
  func.func @_hyperbolic_kernel(%arg0: i32, %arg1: memref<128x32xf32, #tpu.memory_space<vmem>>, %arg2: memref<128x32xf32, #tpu.memory_space<vmem>>, %arg3: memref<1x128xf32, #tpu.memory_space<vmem>>) attributes {dimension_semantics = [#tpu.dimension_semantics<parallel>], iteration_bounds = array<i64: 1>, scalar_prefetch = 0 : i64, scratch_operands = 0 : i64, tpu.core_type = #tpu.core_type<tc>, window_params = [{transform_indices = @transform_0, window_bounds = array<i64: 128, 32>}, {transform_indices = @transform_1, window_bounds = array<i64: 128, 32>}, {transform_indices = @transform_2, window_bounds = array<i64: 1, 128>}]} {
    %c0 = arith.constant 0 : index
    %c0_0 = arith.constant 0 : index
    %0 = vector.load %arg1[%c0, %c0_0] : memref<128x32xf32, #tpu.memory_space<vmem>>, vector<128x32xf32>
    %c0_1 = arith.constant 0 : index
    %c0_2 = arith.constant 0 : index
    %1 = vector.load %arg2[%c0_1, %c0_2] : memref<128x32xf32, #tpu.memory_space<vmem>>, vector<128x32xf32>
    %2 = vector.shape_cast %0 : vector<128x32xf32> to vector<1x128x32xf32>
    %3 = vector.shape_cast %1 : vector<128x32xf32> to vector<1x128x32xf32>
    %4 = arith.subf %2, %3 : vector<1x128x32xf32>
    %5 = arith.mulf %4, %4 : vector<1x128x32xf32>
    %cst = arith.constant dense<0.000000e+00> : vector<1x128xf32>
    %6 = vector.multi_reduction <add>, %5, %cst [2] : vector<1x128x32xf32> to vector<1x128xf32>
    %7 = arith.mulf %2, %2 : vector<1x128x32xf32>
    %cst_3 = arith.constant dense<0.000000e+00> : vector<1x128xf32>
    %8 = vector.multi_reduction <add>, %7, %cst_3 [2] : vector<1x128x32xf32> to vector<1x128xf32>
    %cst_4 = arith.constant 1.000000e+00 : f32
    %9 = vector.broadcast %cst_4 : f32 to vector<1x128xf32>
    %10 = arith.subf %9, %8 : vector<1x128xf32>
    %11 = arith.mulf %3, %3 : vector<1x128x32xf32>
    %cst_5 = arith.constant dense<0.000000e+00> : vector<1x128xf32>
    %12 = vector.multi_reduction <add>, %11, %cst_5 [2] : vector<1x128x32xf32> to vector<1x128xf32>
    %cst_6 = arith.constant 1.000000e+00 : f32
    %13 = vector.broadcast %cst_6 : f32 to vector<1x128xf32>
    %14 = arith.subf %13, %12 : vector<1x128xf32>
    %cst_7 = arith.constant 2.000000e+00 : f32
    %15 = vector.broadcast %cst_7 : f32 to vector<1x128xf32>
    %16 = arith.mulf %15, %6 : vector<1x128xf32>
    %17 = arith.mulf %10, %14 : vector<1x128xf32>
    %18 = arith.divf %16, %17 : vector<1x128xf32>
    %cst_8 = arith.constant 2.000000e+00 : f32
    %19 = vector.broadcast %cst_8 : f32 to vector<1x128xf32>
    %20 = arith.mulf %19, %18 : vector<1x128xf32>
    %cst_9 = arith.constant 1.000000e-07 : f32
    %21 = vector.broadcast %cst_9 : f32 to vector<1x128xf32>
    %22 = arith.addf %20, %21 : vector<1x128xf32>
    %c128_i32 = arith.constant 128 : i32
    %23 = arith.muli %arg0, %c128_i32 : i32
    %24 = tpu.iota {dimensions = array<i32: 0>} : vector<1x128xi32>
    %c128_i32_10 = arith.constant 128 : i32
    %25 = vector.broadcast %c128_i32_10 : i32 to vector<1x128xi32>
    %26 = arith.muli %24, %25 : vector<1x128xi32>
    %27 = vector.broadcast %23 : i32 to vector<1x128xi32>
    %28 = arith.addi %27, %26 : vector<1x128xi32>
    %29 = tpu.iota {dimensions = array<i32: 1>} : vector<1x128xi32>
    %30 = arith.addi %28, %29 : vector<1x128xi32>
    %c16_i32 = arith.constant 16 : i32
    %31 = vector.broadcast %c16_i32 : i32 to vector<1x128xi32>
    %32 = arith.cmpi slt, %30, %31 : vector<1x128xi32>
    %cst_11 = arith.constant 1.000000e+00 : f32
    %33 = vector.broadcast %cst_11 : f32 to vector<1x128xf32>
    %34 = arith.select %32, %22, %33 : vector<1x128xi1>, vector<1x128xf32>
    %cst_12 = arith.constant 2.000000e+00 : f32
    %35 = vector.broadcast %cst_12 : f32 to vector<1x128xf32>
    %36 = arith.addf %34, %35 : vector<1x128xf32>
    %37 = arith.mulf %34, %36 : vector<1x128xf32>
    %38 = math.sqrt %37 : vector<1x128xf32>
    %39 = arith.addf %34, %38 : vector<1x128xf32>
    %cst_13 = arith.constant 1.000000e+00 : f32
    %40 = vector.broadcast %cst_13 : f32 to vector<1x128xf32>
    %41 = arith.addf %40, %39 : vector<1x128xf32>
    %cst_14 = arith.constant 1.000000e+00 : f32
    %42 = vector.broadcast %cst_14 : f32 to vector<1x128xf32>
    %43 = arith.cmpf oeq, %41, %42 : vector<1x128xf32>
    %cst_15 = arith.constant 1.000000e+00 : f32
    %44 = vector.broadcast %cst_15 : f32 to vector<1x128xf32>
    %45 = arith.subf %41, %44 : vector<1x128xf32>
    %cst_16 = arith.constant 1.000000e+00 : f32
    %46 = vector.broadcast %cst_16 : f32 to vector<1x128xf32>
    %47 = arith.select %43, %46, %45 : vector<1x128xi1>, vector<1x128xf32>
    %cst_17 = arith.constant 1.000000e+00 : f32
    %48 = vector.broadcast %cst_17 : f32 to vector<1x128xf32>
    %49 = arith.cmpf oeq, %41, %48 : vector<1x128xf32>
    %50 = math.log %41 : vector<1x128xf32>
    %51 = arith.divf %39, %47 : vector<1x128xf32>
    %52 = arith.mulf %50, %51 : vector<1x128xf32>
    %53 = arith.select %49, %39, %52 : vector<1x128xi1>, vector<1x128xf32>
    %cst_18 = arith.constant 0.00999999977 : f32
    %54 = vector.broadcast %cst_18 : f32 to vector<1x128xf32>
    %55 = arith.mulf %53, %54 : vector<1x128xf32>
    %c0_19 = arith.constant 0 : index
    %c0_20 = arith.constant 0 : index
    %56 = vector.load %arg3[%c0_19, %c0_20] : memref<1x128xf32, #tpu.memory_space<vmem>>, vector<1x128xf32>
    tpu.vector_store %arg3[%c0_19, %c0_20], %55 {strides = array<i32>} : memref<1x128xf32, #tpu.memory_space<vmem>>, vector<1x128xf32>,
    return
  }
  func.func @transform_0(%arg0: i32) -> (i32, i32) {
    %c0_i32 = arith.constant 0 : i32
    %c0_i32_0 = arith.constant 0 : i32
    return %arg0, %c0_i32 : i32, i32
  }
  func.func @transform_1(%arg0: i32) -> (i32, i32) {
    %c0_i32 = arith.constant 0 : i32
    %c0_i32_0 = arith.constant 0 : i32
    return %arg0, %c0_i32 : i32, i32
  }
  func.func @transform_2(%arg0: i32) -> (i32, i32) {
    %c0_i32 = arith.constant 0 : i32
    %c0_i32_0 = arith.constant 0 : i32
    return %arg0, %c0_i32 : i32, i32
  }
}

</mosaic_0001>

<llo_original>
// kernel: tpu_custom_call.1
$region0: #{tpu_custom_call.1}
  #allocation0 [shape = 'u32[]', space=smem, size = 0x4, offset = 0x4, fixed_abs, tag = 'smem constant byte address 0x4 - core index']
  #allocation1 [shape = 'u32[144,128]{1,0:T(1,128)}', space=vmem, size = 0x12000, scoped, tag = 'internal scratch']
  %s0 = inlined_call_operand.hbm [shape: f32[16,32], index: 0, kind: input, shape index: {}]
  %s1 = inlined_call_operand.hbm [shape: f32[16,32], index: 1, kind: input, shape index: {}]
  %s2 = inlined_call_operand.hbm [shape: f32[1,128], index: 2, kind: output, shape index: {}]
  %s3 = sld [smem:[#allocation0]]
  $region26: #{tpu_custom_call.1} parent=0
    _
  %s5 = ssub.s32 1, %s3
  %s6 = scalar_select 0, %s5, %s3
  $region1: #{tpu_custom_call.1} parent=0
    #allocation2 [shape = 'u8[65536]{0}', space=vmem, size = 0x10000, scoped, tag = 'input window, operand 0, single buffered']
    #allocation3 [shape = 's32[1]{0}', space=sflag, size = 0x4, scoped, tag = 'scoped memory for tpu_custom_call.1']
    #allocation4 [shape = 's32[1]{0}', space=sflag, size = 0x4, scoped, tag = 'scoped memory for tpu_custom_call.1']
    #allocation5 [shape = 'u8[65536]{0}', space=vmem, size = 0x10000, scoped, tag = 'input window, operand 1, single buffered']
    #allocation6 [shape = 's32[1]{0}', space=sflag, size = 0x4, scoped, tag = 'scoped memory for tpu_custom_call.1']
    #allocation7 [shape = 'u8[512]{0}', space=vmem, size = 0x400, scoped, tag = 'output window, operand 0, single buffered']
    %7 = vsyncpa [#allocation3], 0
    %8 = vsyncpa [#allocation6], 0
    %9 = vsyncpa [#allocation4], 0
    // Predicated region
    $region2: #{tpu_custom_call.1} parent=1 // pred_check
      _
    $region3: #{tpu_custom_call.1} parent=1 // pred_check_branch
      %11 = sbr.rel (0) target = $region5
    $region4: #{tpu_custom_call.1} parent=1 // pred_region
      %s13 = ssub.s32 2048, 256
      %14 = vsyncadd [#allocation3], %s13
      %s15 = sshll.u32 [#allocation2], 4
      %s16 = int_to_ptr.vmem [resolvable:$true] %s15
      %21 = dma.hbm_to_vmem [thread:$0]  %s0, 256, %s16, [#allocation3], 128, 128, 8
    $region5: #{tpu_custom_call.1} parent=1 // pred_fallthru
      _
    // Predicated region
    $region6: #{tpu_custom_call.1} parent=1 // pred_check
      _
    $region7: #{tpu_custom_call.1} parent=1 // pred_check_branch
      %23 = sbr.rel (0) target = $region9
    $region8: #{tpu_custom_call.1} parent=1 // pred_region
      %s25 = ssub.s32 2048, 256
      %26 = vsyncadd [#allocation6], %s25
      %s27 = sshll.u32 [#allocation5], 4
      %s28 = int_to_ptr.vmem [resolvable:$true] %s27
      %33 = dma.hbm_to_vmem [thread:$0]  %s1, 256, %s28, [#allocation6], 128, 128, 8
    $region9: #{tpu_custom_call.1} parent=1 // pred_fallthru
      _
    // Predicated region
    $region10: #{tpu_custom_call.1} parent=1 // pred_check
      _
    $region11: #{tpu_custom_call.1} parent=1 // pred_check_branch
      %35 = sbr.rel (0) target = $region13
    $region12: #{tpu_custom_call.1} parent=1 // pred_region
      %36 = dma.done [#allocation3], 2048
    $region13: #{tpu_custom_call.1} parent=1 // pred_fallthru
      _
    // Predicated region
    $region14: #{tpu_custom_call.1} parent=1 // pred_check
      _
    $region15: #{tpu_custom_call.1} parent=1 // pred_check_branch
      %38 = sbr.rel (0) target = $region17
    $region16: #{tpu_custom_call.1} parent=1 // pred_region
      %39 = dma.done [#allocation6], 2048
    $region17: #{tpu_custom_call.1} parent=1 // pred_fallthru
      _
    %v40 = vld [vmem:[#allocation2] sm:$0xff]
    %v41 = vld [vmem:[#allocation2 + $0x8] sm:$0xff]
    %v42 = vld [vmem:[#allocation2 + $0x10] sm:$0xff]
    %v43 = vld [vmem:[#allocation2 + $0x18] sm:$0xff]
    %v44 = vld [vmem:[#allocation2 + $0x20] sm:$0xff]
    %v45 = vld [vmem:[#allocation2 + $0x28] sm:$0xff]
    %v46 = vld [vmem:[#allocation2 + $0x30] sm:$0xff]
    %v47 = vld [vmem:[#allocation2 + $0x38] sm:$0xff]
    %v48 = vld [vmem:[#allocation2 + $0x40] sm:$0xff]
    %v49 = vld [vmem:[#allocation2 + $0x48] sm:$0xff]
    %v50 = vld [vmem:[#allocation2 + $0x50] sm:$0xff]
    %v51 = vld [vmem:[#allocation2 + $0x58] sm:$0xff]
    %v52 = vld [vmem:[#allocation2 + $0x60] sm:$0xff]
    %v53 = vld [vmem:[#allocation2 + $0x68] sm:$0xff]
    %v54 = vld [vmem:[#allocation2 + $0x70] sm:$0xff]
    %v55 = vld [vmem:[#allocation2 + $0x78] sm:$0xff]
    %v56 = vld [vmem:[#allocation5] sm:$0xff]
    %v57 = vld [vmem:[#allocation5 + $0x8] sm:$0xff]
    %v58 = vld [vmem:[#allocation5 + $0x10] sm:$0xff]
    %v59 = vld [vmem:[#allocation5 + $0x18] sm:$0xff]
    %v60 = vld [vmem:[#allocation5 + $0x20] sm:$0xff]
    %v61 = vld [vmem:[#allocation5 + $0x28] sm:$0xff]
    %v62 = vld [vmem:[#allocation5 + $0x30] sm:$0xff]
    %v63 = vld [vmem:[#allocation5 + $0x38] sm:$0xff]
    %v64 = vld [vmem:[#allocation5 + $0x40] sm:$0xff]
    %v65 = vld [vmem:[#allocation5 + $0x48] sm:$0xff]
    %v66 = vld [vmem:[#allocation5 + $0x50] sm:$0xff]
    %v67 = vld [vmem:[#allocation5 + $0x58] sm:$0xff]
    %v68 = vld [vmem:[#allocation5 + $0x60] sm:$0xff]
    %v69 = vld [vmem:[#allocation5 + $0x68] sm:$0xff]
    %v70 = vld [vmem:[#allocation5 + $0x70] sm:$0xff]
    %v71 = vld [vmem:[#allocation5 + $0x78] sm:$0xff]
    %v72 = vsub.f32 %v40, %v56
    %v73 = vsub.f32 %v41, %v57
    %v74 = vsub.f32 %v42, %v58
    %v75 = vsub.f32 %v43, %v59
    %v76 = vsub.f32 %v44, %v60
    %v77 = vsub.f32 %v45, %v61
    %v78 = vsub.f32 %v46, %v62
    %v79 = vsub.f32 %v47, %v63
    %v80 = vsub.f32 %v48, %v64
    %v81 = vsub.f32 %v49, %v65
    %v82 = vsub.f32 %v50, %v66
    %v83 = vsub.f32 %v51, %v67
    %v84 = vsub.f32 %v52, %v68
    %v85 = vsub.f32 %v53, %v69
    %v86 = vsub.f32 %v54, %v70
    %v87 = vsub.f32 %v55, %v71
    %v88 = vmul.f32 %v72, %v72
    %v89 = vmul.f32 %v73, %v73
    %v90 = vmul.f32 %v74, %v74
    %v91 = vmul.f32 %v75, %v75
    %v92 = vmul.f32 %v76, %v76
    %v93 = vmul.f32 %v77, %v77
    %v94 = vmul.f32 %v78, %v78
    %v95 = vmul.f32 %v79, %v79
    %v96 = vmul.f32 %v80, %v80
    %v97 = vmul.f32 %v81, %v81
    %v98 = vmul.f32 %v82, %v82
    %v99 = vmul.f32 %v83, %v83
    %v100 = vmul.f32 %v84, %v84
    %v101 = vmul.f32 %v85, %v85
    %v102 = vmul.f32 %v86, %v86
    %v103 = vmul.f32 %v87, %v87
    %vm104 = vcmask 261120
    %v105 = vsel %vm104, %v88, 0.0
    %106 = vadd.xlane.f32.xlu0 %v105
    %v107 = vpop.xlane.xlu0 %106
    %v108 = vsel %vm104, %v89, 0.0
    %109 = vadd.xlane.f32.xlu0 %v108
    %v110 = vpop.xlane.xlu0 %109
    %v111 = vsel %vm104, %v90, 0.0
    %112 = vadd.xlane.f32.xlu0 %v111
    %v113 = vpop.xlane.xlu0 %112
    %v114 = vsel %vm104, %v91, 0.0
    %115 = vadd.xlane.f32.xlu0 %v114
    %v116 = vpop.xlane.xlu0 %115
    %v117 = vsel %vm104, %v92, 0.0
    %118 = vadd.xlane.f32.xlu0 %v117
    %v119 = vpop.xlane.xlu0 %118
    %v120 = vsel %vm104, %v93, 0.0
    %121 = vadd.xlane.f32.xlu0 %v120
    %v122 = vpop.xlane.xlu0 %121
    %v123 = vsel %vm104, %v94, 0.0
    %124 = vadd.xlane.f32.xlu0 %v123
    %v125 = vpop.xlane.xlu0 %124
    %v126 = vsel %vm104, %v95, 0.0
    %127 = vadd.xlane.f32.xlu0 %v126
    %v128 = vpop.xlane.xlu0 %127
    %v129 = vsel %vm104, %v96, 0.0
    %130 = vadd.xlane.f32.xlu0 %v129
    %v131 = vpop.xlane.xlu0 %130
    %v132 = vsel %vm104, %v97, 0.0
    %133 = vadd.xlane.f32.xlu0 %v132
    %v134 = vpop.xlane.xlu0 %133
    %v135 = vsel %vm104, %v98, 0.0
    %136 = vadd.xlane.f32.xlu0 %v135
    %v137 = vpop.xlane.xlu0 %136
    %v138 = vsel %vm104, %v99, 0.0
    %139 = vadd.xlane.f32.xlu0 %v138
    %v140 = vpop.xlane.xlu0 %139
    %v141 = vsel %vm104, %v100, 0.0
    %142 = vadd.xlane.f32.xlu0 %v141
    %v143 = vpop.xlane.xlu0 %142
    %v144 = vsel %vm104, %v101, 0.0
    %145 = vadd.xlane.f32.xlu0 %v144
    %v146 = vpop.xlane.xlu0 %145
    %v147 = vsel %vm104, %v102, 0.0
    %148 = vadd.xlane.f32.xlu0 %v147
    %v149 = vpop.xlane.xlu0 %148
    %v150 = vsel %vm104, %v103, 0.0
    %151 = vadd.xlane.f32.xlu0 %v150
    %v152 = vpop.xlane.xlu0 %151
    %v153 = vmul.f32 %v40, %v40
    %v154 = vmul.f32 %v41, %v41
    %v155 = vmul.f32 %v42, %v42
    %v156 = vmul.f32 %v43, %v43
    %v157 = vmul.f32 %v44, %v44
    %v158 = vmul.f32 %v45, %v45
    %v159 = vmul.f32 %v46, %v46
    %v160 = vmul.f32 %v47, %v47
    %v161 = vmul.f32 %v48, %v48
    %v162 = vmul.f32 %v49, %v49
    %v163 = vmul.f32 %v50, %v50
    %v164 = vmul.f32 %v51, %v51
    %v165 = vmul.f32 %v52, %v52
    %v166 = vmul.f32 %v53, %v53
    %v167 = vmul.f32 %v54, %v54
    %v168 = vmul.f32 %v55, %v55
    %v169 = vsel %vm104, %v153, 0.0
    %170 = vadd.xlane.f32.xlu0 %v169
    %v171 = vpop.xlane.xlu0 %170
    %v172 = vsel %vm104, %v154, 0.0
    %173 = vadd.xlane.f32.xlu0 %v172
    %v174 = vpop.xlane.xlu0 %173
    %v175 = vsel %vm104, %v155, 0.0
    %176 = vadd.xlane.f32.xlu0 %v175
    %v177 = vpop.xlane.xlu0 %176
    %v178 = vsel %vm104, %v156, 0.0
    %179 = vadd.xlane.f32.xlu0 %v178
    %v180 = vpop.xlane.xlu0 %179
    %v181 = vsel %vm104, %v157, 0.0
    %182 = vadd.xlane.f32.xlu0 %v181
    %v183 = vpop.xlane.xlu0 %182
    %v184 = vsel %vm104, %v158, 0.0
    %185 = vadd.xlane.f32.xlu0 %v184
    %v186 = vpop.xlane.xlu0 %185
    %v187 = vsel %vm104, %v159, 0.0
    %188 = vadd.xlane.f32.xlu0 %v187
    %v189 = vpop.xlane.xlu0 %188
    %v190 = vsel %vm104, %v160, 0.0
    %191 = vadd.xlane.f32.xlu0 %v190
    %v192 = vpop.xlane.xlu0 %191
    %v193 = vsel %vm104, %v161, 0.0
    %194 = vadd.xlane.f32.xlu0 %v193
    %v195 = vpop.xlane.xlu0 %194
    %v196 = vsel %vm104, %v162, 0.0
    %197 = vadd.xlane.f32.xlu0 %v196
    %v198 = vpop.xlane.xlu0 %197
    %v199 = vsel %vm104, %v163, 0.0
    %200 = vadd.xlane.f32.xlu0 %v199
    %v201 = vpop.xlane.xlu0 %200
    %v202 = vsel %vm104, %v164, 0.0
    %203 = vadd.xlane.f32.xlu0 %v202
    %v204 = vpop.xlane.xlu0 %203
    %v205 = vsel %vm104, %v165, 0.0
    %206 = vadd.xlane.f32.xlu0 %v205
    %v207 = vpop.xlane.xlu0 %206
    %v208 = vsel %vm104, %v166, 0.0
    %209 = vadd.xlane.f32.xlu0 %v208
    %v210 = vpop.xlane.xlu0 %209
    %v211 = vsel %vm104, %v167, 0.0
    %212 = vadd.xlane.f32.xlu0 %v211
    %v213 = vpop.xlane.xlu0 %212
    %v214 = vsel %vm104, %v168, 0.0
    %215 = vadd.xlane.f32.xlu0 %v214
    %v216 = vpop.xlane.xlu0 %215
    %v217 = vsub.f32 1.0, %v171
    %v218 = vsub.f32 1.0, %v174
    %v219 = vsub.f32 1.0, %v177
    %v220 = vsub.f32 1.0, %v180
    %v221 = vsub.f32 1.0, %v183
    %v222 = vsub.f32 1.0, %v186
    %v223 = vsub.f32 1.0, %v189
    %v224 = vsub.f32 1.0, %v192
    %v225 = vsub.f32 1.0, %v195
    %v226 = vsub.f32 1.0, %v198
    %v227 = vsub.f32 1.0, %v201
    %v228 = vsub.f32 1.0, %v204
    %v229 = vsub.f32 1.0, %v207
    %v230 = vsub.f32 1.0, %v210
    %v231 = vsub.f32 1.0, %v213
    %v232 = vsub.f32 1.0, %v216
    %v233 = vmul.f32 %v56, %v56
    %v234 = vmul.f32 %v57, %v57
    %v235 = vmul.f32 %v58, %v58
    %v236 = vmul.f32 %v59, %v59
    %v237 = vmul.f32 %v60, %v60
    %v238 = vmul.f32 %v61, %v61
    %v239 = vmul.f32 %v62, %v62
    %v240 = vmul.f32 %v63, %v63
    %v241 = vmul.f32 %v64, %v64
    %v242 = vmul.f32 %v65, %v65
    %v243 = vmul.f32 %v66, %v66
    %v244 = vmul.f32 %v67, %v67
    %v245 = vmul.f32 %v68, %v68
    %v246 = vmul.f32 %v69, %v69
    %v247 = vmul.f32 %v70, %v70
    %v248 = vmul.f32 %v71, %v71
    %v249 = vsel %vm104, %v233, 0.0
    %250 = vadd.xlane.f32.xlu0 %v249
    %v251 = vpop.xlane.xlu0 %250
    %v252 = vsel %vm104, %v234, 0.0
    %253 = vadd.xlane.f32.xlu0 %v252
    %v254 = vpop.xlane.xlu0 %253
    %v255 = vsel %vm104, %v235, 0.0
    %256 = vadd.xlane.f32.xlu0 %v255
    %v257 = vpop.xlane.xlu0 %256
    %v258 = vsel %vm104, %v236, 0.0
    %259 = vadd.xlane.f32.xlu0 %v258
    %v260 = vpop.xlane.xlu0 %259
    %v261 = vsel %vm104, %v237, 0.0
    %262 = vadd.xlane.f32.xlu0 %v261
    %v263 = vpop.xlane.xlu0 %262
    %v264 = vsel %vm104, %v238, 0.0
    %265 = vadd.xlane.f32.xlu0 %v264
    %v266 = vpop.xlane.xlu0 %265
    %v267 = vsel %vm104, %v239, 0.0
    %268 = vadd.xlane.f32.xlu0 %v267
    %v269 = vpop.xlane.xlu0 %268
    %v270 = vsel %vm104, %v240, 0.0
    %271 = vadd.xlane.f32.xlu0 %v270
    %v272 = vpop.xlane.xlu0 %271
    %v273 = vsel %vm104, %v241, 0.0
    %274 = vadd.xlane.f32.xlu0 %v273
    %v275 = vpop.xlane.xlu0 %274
    %v276 = vsel %vm104, %v242, 0.0
    %277 = vadd.xlane.f32.xlu0 %v276
    %v278 = vpop.xlane.xlu0 %277
    %v279 = vsel %vm104, %v243, 0.0
    %280 = vadd.xlane.f32.xlu0 %v279
    %v281 = vpop.xlane.xlu0 %280
    %v282 = vsel %vm104, %v244, 0.0
    %283 = vadd.xlane.f32.xlu0 %v282
    %v284 = vpop.xlane.xlu0 %283
    %v285 = vsel %vm104, %v245, 0.0
    %286 = vadd.xlane.f32.xlu0 %v285
    %v287 = vpop.xlane.xlu0 %286
    %v288 = vsel %vm104, %v246, 0.0
    %289 = vadd.xlane.f32.xlu0 %v288
    %v290 = vpop.xlane.xlu0 %289
    %v291 = vsel %vm104, %v247, 0.0
    %292 = vadd.xlane.f32.xlu0 %v291
    %v293 = vpop.xlane.xlu0 %292
    %v294 = vsel %vm104, %v248, 0.0
    %295 = vadd.xlane.f32.xlu0 %v294
    %v296 = vpop.xlane.xlu0 %295
    %v297 = vsub.f32 1.0, %v251
    %v298 = vsub.f32 1.0, %v254
    %v299 = vsub.f32 1.0, %v257
    %v300 = vsub.f32 1.0, %v260
    %v301 = vsub.f32 1.0, %v263
    %v302 = vsub.f32 1.0, %v266
    %v303 = vsub.f32 1.0, %v269
    %v304 = vsub.f32 1.0, %v272
    %v305 = vsub.f32 1.0, %v275
    %v306 = vsub.f32 1.0, %v278
    %v307 = vsub.f32 1.0, %v281
    %v308 = vsub.f32 1.0, %v284
    %v309 = vsub.f32 1.0, %v287
    %v310 = vsub.f32 1.0, %v290
    %v311 = vsub.f32 1.0, %v293
    %v312 = vsub.f32 1.0, %v296
    %v313 = vmul.f32 %v107, 2.0
    %v314 = vmul.f32 %v110, 2.0
    %v315 = vmul.f32 %v113, 2.0
    %v316 = vmul.f32 %v116, 2.0
    %v317 = vmul.f32 %v119, 2.0
    %v318 = vmul.f32 %v122, 2.0
    %v319 = vmul.f32 %v125, 2.0
    %v320 = vmul.f32 %v128, 2.0
    %v321 = vmul.f32 %v131, 2.0
    %v322 = vmul.f32 %v134, 2.0
    %v323 = vmul.f32 %v137, 2.0
    %v324 = vmul.f32 %v140, 2.0
    %v325 = vmul.f32 %v143, 2.0
    %v326 = vmul.f32 %v146, 2.0
    %v327 = vmul.f32 %v149, 2.0
    %v328 = vmul.f32 %v152, 2.0
    %v329 = vmul.f32 %v217, %v297
    %v330 = vmul.f32 %v218, %v298
    %v331 = vmul.f32 %v219, %v299
    %v332 = vmul.f32 %v220, %v300
    %v333 = vmul.f32 %v221, %v301
    %v334 = vmul.f32 %v222, %v302
    %v335 = vmul.f32 %v223, %v303
    %v336 = vmul.f32 %v224, %v304
    %v337 = vmul.f32 %v225, %v305
    %v338 = vmul.f32 %v226, %v306
    %v339 = vmul.f32 %v227, %v307
    %v340 = vmul.f32 %v228, %v308
    %v341 = vmul.f32 %v229, %v309
    %v342 = vmul.f32 %v230, %v310
    %v343 = vmul.f32 %v231, %v311
    %v344 = vmul.f32 %v232, %v312
    %v345 = vrcp.pop %v329
    %v346 = vmul.f32 %v313, %v345
    %v347 = vrcp.pop %v330
    %v348 = vmul.f32 %v314, %v347
    %v349 = vrcp.pop %v331
    %v350 = vmul.f32 %v315, %v349
    %v351 = vrcp.pop %v332
    %v352 = vmul.f32 %v316, %v351
    %v353 = vrcp.pop %v333
    %v354 = vmul.f32 %v317, %v353
    %v355 = vrcp.pop %v334
    %v356 = vmul.f32 %v318, %v355
    %v357 = vrcp.pop %v335
    %v358 = vmul.f32 %v319, %v357
    %v359 = vrcp.pop %v336
    %v360 = vmul.f32 %v320, %v359
    %v361 = vrcp.pop %v337
    %v362 = vmul.f32 %v321, %v361
    %v363 = vrcp.pop %v338
    %v364 = vmul.f32 %v322, %v363
    %v365 = vrcp.pop %v339
    %v366 = vmul.f32 %v323, %v365
    %v367 = vrcp.pop %v340
    %v368 = vmul.f32 %v324, %v367
    %v369 = vrcp.pop %v341
    %v370 = vmul.f32 %v325, %v369
    %v371 = vrcp.pop %v342
    %v372 = vmul.f32 %v326, %v371
    %v373 = vrcp.pop %v343
    %v374 = vmul.f32 %v327, %v373
    %v375 = vrcp.pop %v344
    %v376 = vmul.f32 %v328, %v375
    %v377 = vmul.f32 %v346, 2.0
    %v378 = vmul.f32 %v348, 2.0
    %v379 = vmul.f32 %v350, 2.0
    %v380 = vmul.f32 %v352, 2.0
    %v381 = vmul.f32 %v354, 2.0
    %v382 = vmul.f32 %v356, 2.0
    %v383 = vmul.f32 %v358, 2.0
    %v384 = vmul.f32 %v360, 2.0
    %v385 = vmul.f32 %v362, 2.0
    %v386 = vmul.f32 %v364, 2.0
    %v387 = vmul.f32 %v366, 2.0
    %v388 = vmul.f32 %v368, 2.0
    %v389 = vmul.f32 %v370, 2.0
    %v390 = vmul.f32 %v372, 2.0
    %v391 = vmul.f32 %v374, 2.0
    %v392 = vmul.f32 %v376, 2.0
    %v393 = vadd.f32 %v377, 1e-07
    %v394 = vadd.f32 %v378, 1e-07
    %v395 = vadd.f32 %v379, 1e-07
    %v396 = vadd.f32 %v380, 1e-07
    %v397 = vadd.f32 %v381, 1e-07
    %v398 = vadd.f32 %v382, 1e-07
    %v399 = vadd.f32 %v383, 1e-07
    %v400 = vadd.f32 %v384, 1e-07
    %v401 = vadd.f32 %v385, 1e-07
    %v402 = vadd.f32 %v386, 1e-07
    %v403 = vadd.f32 %v387, 1e-07
    %v404 = vadd.f32 %v388, 1e-07
    %v405 = vadd.f32 %v389, 1e-07
    %v406 = vadd.f32 %v390, 1e-07
    %v407 = vadd.f32 %v391, 1e-07
    %v408 = vadd.f32 %v392, 1e-07
    %s409 = smul.u32 0, 128
    %v410 = vlaneseq
    %v411 = vshrl.u32 %v410, 7
    %v412 = vmul.u32 %v411, 128
    %v413 = vstv %s409
    %v414 = vadd.s32 %v413, %v412
    %v415 = vlaneseq
    %v416 = vand.u32 %v415, 127
    %v417 = vadd.s32 %v414, %v416
    %vm418 = vcmp.lt.s32.totalorder %v417, 16
    %v435 = vlaneseq
    %v436 = vshrl.u32 %v435, 7
    %v437 = vsub.s32 %v416, %v436
    %v438 = vrot.slane %v393, %v437
    %v439 = vadd.s32 %v416, 4294967288
    %v440 = vlaneseq
    %v441 = vshrl.u32 %v440, 7
    %v442 = vsub.s32 %v439, %v441
    %v443 = vrot.slane %v394, %v442
    %vm444 = vcmask 130112
    %v445 = vsel %vm444, %v443, %v438
    %v446 = vadd.s32 %v416, 4294967280
    %v447 = vlaneseq
    %v448 = vshrl.u32 %v447, 7
    %v449 = vsub.s32 %v446, %v448
    %v450 = vrot.slane %v395, %v449
    %vm451 = vcmask 195712
    %v452 = vsel %vm451, %v450, %v445
    %v453 = vadd.s32 %v416, 4294967272
    %v454 = vlaneseq
    %v455 = vshrl.u32 %v454, 7
    %v456 = vsub.s32 %v453, %v455
    %v457 = vrot.slane %v396, %v456
    %vm458 = vcmask 261312
    %v459 = vsel %vm458, %v457, %v452
    %v460 = vadd.s32 %v416, 4294967264
    %v461 = vlaneseq
    %v462 = vshrl.u32 %v461, 7
    %v463 = vsub.s32 %v460, %v462
    %v464 = vrot.slane %v397, %v463
    %vm465 = vcmask 326912
    %v466 = vsel %vm465, %v464, %v459
    %v467 = vadd.s32 %v416, 4294967256
    %v468 = vlaneseq
    %v469 = vshrl.u32 %v468, 7
    %v470 = vsub.s32 %v467, %v469
    %v471 = vrot.slane %v398, %v470
    %vm472 = vcmask 392512
    %v473 = vsel %vm472, %v471, %v466
    %v474 = vadd.s32 %v416, 4294967248
    %v475 = vlaneseq
    %v476 = vshrl.u32 %v475, 7
    %v477 = vsub.s32 %v474, %v476
    %v478 = vrot.slane %v399, %v477
    %vm479 = vcmask 458112
    %v480 = vsel %vm479, %v478, %v473
    %v481 = vadd.s32 %v416, 4294967240
    %v482 = vlaneseq
    %v483 = vshrl.u32 %v482, 7
    %v484 = vsub.s32 %v481, %v483
    %v485 = vrot.slane %v400, %v484
    %vm486 = vcmask 523712
    %v487 = vsel %vm486, %v485, %v480
    %v488 = vadd.s32 %v416, 4294967232
    %v489 = vlaneseq
    %v490 = vshrl.u32 %v489, 7
    %v491 = vsub.s32 %v488, %v490
    %v492 = vrot.slane %v401, %v491
    %vm493 = vcmask 589312
    %v494 = vsel %vm493, %v492, %v487
    %v495 = vadd.s32 %v416, 4294967224
    %v496 = vlaneseq
    %v497 = vshrl.u32 %v496, 7
    %v498 = vsub.s32 %v495, %v497
    %v499 = vrot.slane %v402, %v498
    %vm500 = vcmask 654912
    %v501 = vsel %vm500, %v499, %v494
    %v502 = vadd.s32 %v416, 4294967216
    %v503 = vlaneseq
    %v504 = vshrl.u32 %v503, 7
    %v505 = vsub.s32 %v502, %v504
    %v506 = vrot.slane %v403, %v505
    %vm507 = vcmask 720512
    %v508 = vsel %vm507, %v506, %v501
    %v509 = vadd.s32 %v416, 4294967208
    %v510 = vlaneseq
    %v511 = vshrl.u32 %v510, 7
    %v512 = vsub.s32 %v509, %v511
    %v513 = vrot.slane %v404, %v512
    %vm514 = vcmask 786112
    %v515 = vsel %vm514, %v513, %v508
    %v516 = vadd.s32 %v416, 4294967200
    %v517 = vlaneseq
    %v518 = vshrl.u32 %v517, 7
    %v519 = vsub.s32 %v516, %v518
    %v520 = vrot.slane %v405, %v519
    %vm521 = vcmask 851712
    %v522 = vsel %vm521, %v520, %v515
    %v523 = vadd.s32 %v416, 4294967192
    %v524 = vlaneseq
    %v525 = vshrl.u32 %v524, 7
    %v526 = vsub.s32 %v523, %v525
    %v527 = vrot.slane %v406, %v526
    %vm528 = vcmask 917312
    %v529 = vsel %vm528, %v527, %v522
    %v530 = vadd.s32 %v416, 4294967184
    %v531 = vlaneseq
    %v532 = vshrl.u32 %v531, 7
    %v533 = vsub.s32 %v530, %v532
    %v534 = vrot.slane %v407, %v533
    %vm535 = vcmask 982912
    %v536 = vsel %vm535, %v534, %v529
    %v537 = vadd.s32 %v416, 4294967176
    %v538 = vlaneseq
    %v539 = vshrl.u32 %v538, 7
    %v540 = vsub.s32 %v537, %v539
    %v541 = vrot.slane %v408, %v540
    %vm542 = vcmask 1048512
    %v543 = vsel %vm542, %v541, %v536
    %v545 = vsel %vm418, %v543, 1.0
    %v546 = vadd.f32 %v545, 2.0
    %v547 = vmul.f32 %v545, %v546
    %v548 = vrsqrt.pop %v547
    %v549 = vmul.f32 %v547, %v548
    %vm550 = vcmp.eq.f32.partialorder %v547, inf
    %v551 = vsel %vm550, %v547, %v549
    %vm552 = vcmp.eq.f32.partialorder %v547, 0.0
    %v553 = vand.u32 %v547, 2147483648
    %v554 = vsel %vm552, %v553, %v551
    %v555 = vadd.f32 %v545, %v554
    %v556 = vadd.f32 %v555, 1.0
    %vm557 = vcmp.eq.f32.partialorder %v556, 1.0
    %v558 = vsub.f32 %v556, 1.0
    %v559 = vsel %vm557, 1.0, %v558
    %v560 = vlog2.pop %v556
    %v561 = vmul.f32 %v560, 0.6931472
    %v562 = vrcp.pop %v559
    %v563 = vmul.f32 %v555, %v562
    %v564 = vmul.f32 %v561, %v563
    %v565 = vsel %vm557, %v555, %v564
    %v566 = vmul.f32 %v565, 0.01
    %567 = vst [vmem:[#allocation7] sm:$0x1] %v566
    // Predicated region
    $region18: #{tpu_custom_call.1} parent=1 // pred_check
      _
    $region19: #{tpu_custom_call.1} parent=1 // pred_check_branch
      %569 = sbr.rel (0) target = $region21
    $region20: #{tpu_custom_call.1} parent=1 // pred_region
      %s571 = ssub.s32 16, 16
      %572 = vsyncadd [#allocation4], %s571
      %s574 = sshll.u32 [#allocation7], 4
      %s575 = int_to_ptr.vmem [resolvable:$true] %s574
      %577 = dma.vmem_to_hbm [thread:$0]  %s575, 16, %s2, [#allocation4]
    $region21: #{tpu_custom_call.1} parent=1 // pred_fallthru
      _
    // Predicated region
    $region22: #{tpu_custom_call.1} parent=1 // pred_check
      _
    $region23: #{tpu_custom_call.1} parent=1 // pred_check_branch
      %579 = sbr.rel (0) target = $region25
    $region24: #{tpu_custom_call.1} parent=1 // pred_region
      %580 = dma.done [#allocation4], 16
    $region25: #{tpu_custom_call.1} parent=1 // pred_fallthru
      _
    %581 = vsyncpa [#allocation3], 1
    %582 = vsyncpa [#allocation6], 1
    %583 = vsyncpa [#allocation4], 1

</llo_original>
